<compile_context>
chip_gen: v5e
topology: v5e:2x2
jax: 0.10.0
libtpu: 0.0.40
codegen_flags: <defaults>
</compile_context>

<pallas_src>
import functools

import jax
import jax.numpy as jnp
from jax.experimental import pallas as pl
from jax.experimental.pallas import tpu as pltpu


def _leaky_relu(y):
    # F.leaky_relu default negative_slope = 0.01
    return jnp.where(y >= 0, y, 0.01 * y)


def _gnn_kernel(x_ref, l_ref, w_ref, o_ref, *, K, H):
    # x_ref: (1, N, D)       node features for batch b (shared across heads/layers)
    # l_ref: (1, H*N, N)     L for batch b, heads folded into rows (f32, power-carried in-kernel)
    # w_ref: (K, D, D_out)   all layer weights, resident across the whole grid
    # o_ref: (1, H*N, D_out) output for batch b
    x_bf = x_ref[0].astype(jnp.bfloat16)                                 # (N, D)

    # k = 0: identity support -> leaky_relu(x @ W_0), broadcast over heads.
    y0 = jnp.dot(x_bf, w_ref[0].astype(jnp.bfloat16),
                 preferred_element_type=jnp.float32)                     # (N, D_out)
    acc = jnp.tile(_leaky_relu(y0), (H, 1))                              # (H*N, D_out)

    l = l_ref[0]                                                         # (H*N, N) f32
    pow_l = l                                                            # support_k = L**k (elementwise)
    for k in range(1, K):
        xw = jnp.dot(x_bf, w_ref[k].astype(jnp.bfloat16),
                     preferred_element_type=jnp.float32)                 # (N, D_out)
        y = jnp.dot(pow_l.astype(jnp.bfloat16), xw.astype(jnp.bfloat16),
                    preferred_element_type=jnp.float32)                  # (H*N, D_out)
        acc = acc + _leaky_relu(y)
        if k + 1 < K:
            pow_l = pow_l * l                                            # next elementwise power

    o_ref[0] = acc.astype(o_ref.dtype)


def gnn_net_forward(x, L, weights):
    """Fused GNNnet forward.

    x:       (B, N, D)      float32
    L:       (B, H, N, N)   float32 (per-head graph operator)
    weights: (K, D, D_out)  float32 (one GraphConvolution weight per layer)
    returns  (B, H, N, D_out) float32
    """
    B, N, D = x.shape
    _, H, _, _ = L.shape
    K, _, D_out = weights.shape
    M = H * N  # heads folded into the matmul M dimension

    l_folded = L.reshape(B, M, N)

    grid = (B,)  # K collapsed in-kernel; batch axis shardable across TensorCores

    x_spec = pl.BlockSpec((1, N, D), lambda b: (b, 0, 0))
    l_spec = pl.BlockSpec((1, M, N), lambda b: (b, 0, 0))
    w_spec = pl.BlockSpec((K, D, D_out), lambda b: (0, 0, 0))   # resident, DMA'd once
    out_spec = pl.BlockSpec((1, M, D_out), lambda b: (b, 0, 0))

    # adj@(x@W) reassociation: K small (N,D)@(D,D_out) matmuls + (K-1) (M,N)@(N,D_out).
    flops = 2 * B * (K * N * D * D_out + (K - 1) * M * N * D_out)
    bytes_accessed = 4 * (x.size + l_folded.size + weights.size + B * M * D_out)
    cost = pl.CostEstimate(flops=flops, transcendentals=0,
                           bytes_accessed=bytes_accessed)

    out = pl.pallas_call(
        functools.partial(_gnn_kernel, K=K, H=H),
        out_shape=jax.ShapeDtypeStruct((B, M, D_out), x.dtype),
        grid=grid,
        in_specs=[x_spec, l_spec, w_spec],
        out_specs=out_spec,
        compiler_params=pltpu.CompilerParams(
            dimension_semantics=("parallel",)),
        cost_estimate=cost,
    )(x, l_folded, weights)

    return out.reshape(B, H, N, D_out)


# ----------------------------------------------------------------------------
# Pure-JAX reference (mirrors the PyTorch module exactly, f32 HIGHEST precision)
# ----------------------------------------------------------------------------
def generate_adj_ref(L, K):
    """[I, L, L*L, ...] elementwise powers, stacked: (K, B, H, N, N)."""
    B, H, N, _ = L.shape
    supports = []
    L_iter = L
    for i in range(K):
        if i == 0:
            supports.append(jnp.broadcast_to(jnp.eye(N, dtype=L.dtype), (B, H, N, N)))
        else:
            supports.append(L_iter)
            L_iter = L_iter * L
    return jnp.stack(supports, axis=0)


def xavier_normal(key, shape, dtype=jnp.float32):
    fan_in, fan_out = shape
    std = (2.0 / (fan_in + fan_out)) ** 0.5
    return std * jax.random.normal(key, shape, dtype=dtype)


if __name__ == "__main__":
    # batch=2, heads=4, nodes=16, in_channels=32, out_channels=128 (lane-dense), K=3.
    B, H, N, D_in, D_out, K = 2, 4, 16, 32, 128, 3

    key = jax.random.PRNGKey(0)
    kx, kl, kw = jax.random.split(key, 3)

    x = jax.random.normal(kx, (B, N, D_in), dtype=jnp.float32)
    L = jax.random.uniform(kl, (B, H, N, N), dtype=jnp.float32)
    wkeys = jax.random.split(kw, K)
    weights = jnp.stack([xavier_normal(wkeys[i], (D_in, D_out)) for i in range(K)], axis=0)

    out = gnn_net_forward(x, L, weights)
    out = jax.block_until_ready(out)

    # Reference of the PyTorch GNNnet forward.
    supports = generate_adj_ref(L, K)                                  # (K, B, H, N, N)
    x_rep = jnp.broadcast_to(x[:, None, :, :], (B, H, N, D_in))
    ref = jnp.zeros((B, H, N, D_out), dtype=jnp.float32)
    for i in range(K):
        y = jnp.matmul(jnp.matmul(supports[i], x_rep), weights[i],
                       precision=jax.lax.Precision.HIGHEST)
        ref = ref + jax.nn.leaky_relu(y)                               # slope 0.01

    assert out.shape == (B, H, N, D_out)
    # bf16 MXU inputs (f32 accumulation) vs. f32 HIGHEST reference -> loosened tolerance.
    assert jnp.allclose(out, ref, atol=5e-2, rtol=5e-2), "mismatch vs reference"

    print("KERNEL_OK")
</pallas_src>

<mosaic_0001>
module attributes {stable_mosaic.version = 11 : i64} {
  func.func @_gnn_kernel(%arg0: i32, %arg1: memref<1x16x32xf32, #tpu.memory_space<vmem>>, %arg2: memref<1x64x16xf32, #tpu.memory_space<vmem>>, %arg3: memref<3x32x128xf32, #tpu.memory_space<vmem>>, %arg4: memref<1x64x128xf32, #tpu.memory_space<vmem>>) attributes {dimension_semantics = [#tpu.dimension_semantics<parallel>], iteration_bounds = array<i64: 2>, scalar_prefetch = 0 : i64, scratch_operands = 0 : i64, tpu.core_type = #tpu.core_type<tc>, window_params = [{transform_indices = @transform_0, window_bounds = array<i64: 1, 16, 32>}, {transform_indices = @transform_1, window_bounds = array<i64: 1, 64, 16>}, {pipeline_mode = #tpu.pipeline_mode<synchronous>, transform_indices = @transform_2, window_bounds = array<i64: 3, 32, 128>}, {transform_indices = @transform_3, window_bounds = array<i64: 1, 64, 128>}]} {
    %c0 = arith.constant 0 : index
    %c0_0 = arith.constant 0 : index
    %c0_1 = arith.constant 0 : index
    %0 = vector.load %arg1[%c0, %c0_0, %c0_1] : memref<1x16x32xf32, #tpu.memory_space<vmem>>, vector<1x16x32xf32>
    %1 = vector.shape_cast %0 : vector<1x16x32xf32> to vector<16x32xf32>
    %2 = arith.truncf %1 : vector<16x32xf32> to vector<16x32xbf16>
    %c0_2 = arith.constant 0 : index
    %c0_3 = arith.constant 0 : index
    %c0_4 = arith.constant 0 : index
    %3 = vector.load %arg3[%c0_2, %c0_3, %c0_4] : memref<3x32x128xf32, #tpu.memory_space<vmem>>, vector<1x32x128xf32>
    %4 = vector.shape_cast %3 : vector<1x32x128xf32> to vector<32x128xf32>
    %5 = arith.truncf %4 : vector<32x128xf32> to vector<32x128xbf16>
    %cst = arith.constant dense<0.000000e+00> : vector<16x128xf32>
    %6 = tpu.matmul %2, %5, %cst {dimension_numbers = #tpu.dot_dimension_numbers<[1], [0], [0], [1], [0, 0, 1, 1], [], []>} : vector<16x32xbf16>, vector<32x128xbf16>, vector<16x128xf32> -> vector<16x128xf32>
    %cst_5 = arith.constant 0.000000e+00 : f32
    %7 = vector.broadcast %cst_5 : f32 to vector<16x128xf32>
    %8 = arith.cmpf oge, %6, %7 : vector<16x128xf32>
    %cst_6 = arith.constant 0.00999999977 : f32
    %9 = vector.broadcast %cst_6 : f32 to vector<16x128xf32>
    %10 = arith.mulf %9, %6 : vector<16x128xf32>
    %11 = arith.select %8, %6, %10 : vector<16x128xi1>, vector<16x128xf32>
    %12 = tpu.concatenate %11, %11, %11, %11 in 0 : vector<16x128xf32>, vector<16x128xf32>, vector<16x128xf32>, vector<16x128xf32> -> vector<64x128xf32>
    %c0_7 = arith.constant 0 : index
    %c0_8 = arith.constant 0 : index
    %c0_9 = arith.constant 0 : index
    %13 = vector.load %arg2[%c0_7, %c0_8, %c0_9] : memref<1x64x16xf32, #tpu.memory_space<vmem>>, vector<1x64x16xf32>
    %14 = vector.shape_cast %13 : vector<1x64x16xf32> to vector<64x16xf32>
    %c1 = arith.constant 1 : index
    %c0_10 = arith.constant 0 : index
    %c0_11 = arith.constant 0 : index
    %15 = vector.load %arg3[%c1, %c0_10, %c0_11] : memref<3x32x128xf32, #tpu.memory_space<vmem>>, vector<1x32x128xf32>
    %16 = vector.shape_cast %15 : vector<1x32x128xf32> to vector<32x128xf32>
    %17 = arith.truncf %16 : vector<32x128xf32> to vector<32x128xbf16>
    %cst_12 = arith.constant dense<0.000000e+00> : vector<16x128xf32>
    %18 = tpu.matmul %2, %17, %cst_12 {dimension_numbers = #tpu.dot_dimension_numbers<[1], [0], [0], [1], [0, 0, 1, 1], [], []>} : vector<16x32xbf16>, vector<32x128xbf16>, vector<16x128xf32> -> vector<16x128xf32>
    %19 = arith.truncf %14 : vector<64x16xf32> to vector<64x16xbf16>
    %20 = arith.truncf %18 : vector<16x128xf32> to vector<16x128xbf16>
    %cst_13 = arith.constant dense<0.000000e+00> : vector<64x128xf32>
    %21 = tpu.matmul %19, %20, %cst_13 {dimension_numbers = #tpu.dot_dimension_numbers<[1], [0], [0], [1], [0, 0, 1, 1], [], []>} : vector<64x16xbf16>, vector<16x128xbf16>, vector<64x128xf32> -> vector<64x128xf32>
    %cst_14 = arith.constant 0.000000e+00 : f32
    %22 = vector.broadcast %cst_14 : f32 to vector<64x128xf32>
    %23 = arith.cmpf oge, %21, %22 : vector<64x128xf32>
    %cst_15 = arith.constant 0.00999999977 : f32
    %24 = vector.broadcast %cst_15 : f32 to vector<64x128xf32>
    %25 = arith.mulf %24, %21 : vector<64x128xf32>
    %26 = arith.select %23, %21, %25 : vector<64x128xi1>, vector<64x128xf32>
    %27 = arith.addf %12, %26 : vector<64x128xf32>
    %28 = arith.mulf %14, %14 : vector<64x16xf32>
    %c2 = arith.constant 2 : index
    %c0_16 = arith.constant 0 : index
    %c0_17 = arith.constant 0 : index
    %29 = vector.load %arg3[%c2, %c0_16, %c0_17] : memref<3x32x128xf32, #tpu.memory_space<vmem>>, vector<1x32x128xf32>
    %30 = vector.shape_cast %29 : vector<1x32x128xf32> to vector<32x128xf32>
    %31 = arith.truncf %30 : vector<32x128xf32> to vector<32x128xbf16>
    %cst_18 = arith.constant dense<0.000000e+00> : vector<16x128xf32>
    %32 = tpu.matmul %2, %31, %cst_18 {dimension_numbers = #tpu.dot_dimension_numbers<[1], [0], [0], [1], [0, 0, 1, 1], [], []>} : vector<16x32xbf16>, vector<32x128xbf16>, vector<16x128xf32> -> vector<16x128xf32>
    %33 = arith.truncf %28 : vector<64x16xf32> to vector<64x16xbf16>
    %34 = arith.truncf %32 : vector<16x128xf32> to vector<16x128xbf16>
    %cst_19 = arith.constant dense<0.000000e+00> : vector<64x128xf32>
    %35 = tpu.matmul %33, %34, %cst_19 {dimension_numbers = #tpu.dot_dimension_numbers<[1], [0], [0], [1], [0, 0, 1, 1], [], []>} : vector<64x16xbf16>, vector<16x128xbf16>, vector<64x128xf32> -> vector<64x128xf32>
    %cst_20 = arith.constant 0.000000e+00 : f32
    %36 = vector.broadcast %cst_20 : f32 to vector<64x128xf32>
    %37 = arith.cmpf oge, %35, %36 : vector<64x128xf32>
    %cst_21 = arith.constant 0.00999999977 : f32
    %38 = vector.broadcast %cst_21 : f32 to vector<64x128xf32>
    %39 = arith.mulf %38, %35 : vector<64x128xf32>
    %40 = arith.select %37, %35, %39 : vector<64x128xi1>, vector<64x128xf32>
    %41 = arith.addf %27, %40 : vector<64x128xf32>
    %c0_22 = arith.constant 0 : index
    %c0_23 = arith.constant 0 : index
    %c0_24 = arith.constant 0 : index
    %42 = vector.load %arg4[%c0_22, %c0_23, %c0_24] : memref<1x64x128xf32, #tpu.memory_space<vmem>>, vector<1x64x128xf32>
    %43 = vector.shape_cast %42 : vector<1x64x128xf32> to vector<64x128xf32>
    %44 = vector.shape_cast %41 : vector<64x128xf32> to vector<1x64x128xf32>
    tpu.vector_store %arg4[%c0_22, %c0_23, %c0_24], %44 {strides = array<i32>} : memref<1x64x128xf32, #tpu.memory_space<vmem>>, vector<1x64x128xf32>,
    return
  }
  func.func @transform_0(%arg0: i32) -> (i32, i32, i32) {
    %c0_i32 = arith.constant 0 : i32
    %c0_i32_0 = arith.constant 0 : i32
    %c0_i32_1 = arith.constant 0 : i32
    return %arg0, %c0_i32, %c0_i32_0 : i32, i32, i32
  }
  func.func @transform_1(%arg0: i32) -> (i32, i32, i32) {
    %c0_i32 = arith.constant 0 : i32
    %c0_i32_0 = arith.constant 0 : i32
    %c0_i32_1 = arith.constant 0 : i32
    return %arg0, %c0_i32, %c0_i32_0 : i32, i32, i32
  }
  func.func @transform_2(%arg0: i32) -> (i32, i32, i32) {
    %c0_i32 = arith.constant 0 : i32
    %c0_i32_0 = arith.constant 0 : i32
    %c0_i32_1 = arith.constant 0 : i32
    %c0_i32_2 = arith.constant 0 : i32
    return %c0_i32, %c0_i32_0, %c0_i32_1 : i32, i32, i32
  }
  func.func @transform_3(%arg0: i32) -> (i32, i32, i32) {
    %c0_i32 = arith.constant 0 : i32
    %c0_i32_0 = arith.constant 0 : i32
    %c0_i32_1 = arith.constant 0 : i32
    return %arg0, %c0_i32, %c0_i32_0 : i32, i32, i32
  }
}

</mosaic_0001>

<llo_original>
// kernel: tpu_custom_call.1
$region0: #{tpu_custom_call.1}
  #allocation0 [shape = 'u32[]', space=smem, size = 0x4, offset = 0x4, fixed_abs, tag = 'smem constant byte address 0x4 - core index']
  #allocation1 [shape = 'u32[72,128]{1,0:T(1,128)}', space=vmem, size = 0x9000, scoped, tag = 'internal scratch']
  %s0 = inlined_call_operand.vmem [shape: f32[2,16,32], index: 0, kind: input, shape index: {}]
  %s1 = inlined_call_operand.vmem [shape: f32[2,64,16], index: 1, kind: input, shape index: {}]
  %s2 = inlined_call_operand.vmem [shape: f32[3,32,128], index: 2, kind: input, shape index: {}]
  %s3 = inlined_call_operand.hbm [shape: f32[2,64,128], index: 3, kind: output, shape index: {}]
  %s4 = sld [smem:[#allocation0]]
  $region45: #{tpu_custom_call.1} parent=0
    _
  %s6 = ssub.s32 1, %s4
  %s7 = scalar_select 0, %s6, %s4
  $region1: #{tpu_custom_call.1} parent=0
    #allocation2 [shape = 'u8[65536]{0}', space=vmem, size = 0x10000, scoped, tag = 'output window, operand 0']
    #allocation3 [shape = 's32[2]{0}', space=sflag, size = 0x8, scoped, tag = 'scoped memory for tpu_custom_call.1']
    %8 = vsyncpa [#allocation3], 0
    %s9 = scalar_lea.sflag [#allocation3], 1
    %10 = vsyncpa %s9, 0
    loop: start=0, step=1, limit=4
    $region2: #{tpu_custom_call.1} parent=1 // loop_pre_header
      _
    $region3: #{tpu_custom_call.1} parent=1 // loop_header
      %s12 = sphi 0, %s16
      %p13 = scmp.ge.s32.totalorder %s12, 4
      %s22 = sphi 0, %s24
      %s25 = sphi 0, %s22
      %s26 = sphi 0, %s25
      %s42 = sphi 0, %s26
      %s48 = sphi 0, %s50
      %s51 = sphi 0, %s48
      %s52 = sphi 0, %s51
      %s68 = sphi 0, %s52
      %s72 = sphi 0, %s72
      %s74 = sphi 0, %s72
      %s75 = sphi 0, %s74
      %s89 = sphi 0, %s75
      %s95 = sphi 0, %s97
      %s98 = sphi 0, %s95
      %s99 = sphi 0, %s98
      %s115 = sphi 0, %s99
    $region4: #{tpu_custom_call.1} parent=1 // loop_header_branch
      %15 = sbr.rel (%p13) target = $region8
    $region5: #{tpu_custom_call.1} parent=1 // loop_body
      %s17 = ssub.s32 %s12, 1
      %s18 = ssub.s32 %s12, 2
      %s19 = sadd.s32 %s12, 1
      %s20 = ssub.s32 %s12, %s19
      %p21 = scmp.eq.s32.totalorder %s20, 0
      %s23 = sadd.s32 %s22, 1
      %s24 = scalar_select %p21, %s22, %s23
      %p27 = pneg %p21
      %p28 = scmp.eq.s32.totalorder %s12, 1
      %p29 = por %p27, %p28
      %p30 = scmp.ne.s32.totalorder %s22, %s25
      %p31 = scmp.eq.s32.totalorder %s12, 0
      %p32 = por %p30, %p31
      %p33 = scmp.ne.s32.totalorder %s22, %s25
      %p34 = scmp.eq.s32.totalorder %s17, 1
      %p35 = por %p33, %p34
      %p36 = scmp.ne.s32.totalorder %s25, %s26
      %p37 = scmp.eq.s32.totalorder %s17, 0
      %p38 = por %p36, %p37
      %p39 = scmp.ne.s32.totalorder %s25, %s26
      %p40 = scmp.eq.s32.totalorder %s18, 1
      %p41 = por %p39, %p40
      %p43 = scmp.ne.s32.totalorder %s26, %s42
      %p44 = scmp.eq.s32.totalorder %s18, 0
      %p45 = por %p43, %p44
      %s46 = ssub.s32 %s12, %s19
      %p47 = scmp.eq.s32.totalorder %s46, 0
      %s49 = sadd.s32 %s48, 1
      %s50 = scalar_select %p47, %s48, %s49
      %p53 = pneg %p47
      %p54 = scmp.eq.s32.totalorder %s12, 1
      %p55 = por %p53, %p54
      %p56 = scmp.ne.s32.totalorder %s48, %s51
      %p57 = scmp.eq.s32.totalorder %s12, 0
      %p58 = por %p56, %p57
      %p59 = scmp.ne.s32.totalorder %s48, %s51
      %p60 = scmp.eq.s32.totalorder %s17, 1
      %p61 = por %p59, %p60
      %p62 = scmp.ne.s32.totalorder %s51, %s52
      %p63 = scmp.eq.s32.totalorder %s17, 0
      %p64 = por %p62, %p63
      %p65 = scmp.ne.s32.totalorder %s51, %s52
      %p66 = scmp.eq.s32.totalorder %s18, 1
      %p67 = por %p65, %p66
      %p69 = scmp.ne.s32.totalorder %s52, %s68
      %p70 = scmp.eq.s32.totalorder %s18, 0
      %p71 = por %p69, %p70
      %s73 = sadd.s32 %s72, 1
      %p76 = scmp.eq.s32.totalorder %s12, 1
      %p77 = scmp.ne.s32.totalorder %s72, %s74
      %p78 = scmp.eq.s32.totalorder %s12, 0
      %p79 = por %p77, %p78
      %p80 = scmp.ne.s32.totalorder %s72, %s74
      %p81 = scmp.eq.s32.totalorder %s17, 1
      %p82 = por %p80, %p81
      %p83 = scmp.ne.s32.totalorder %s74, %s75
      %p84 = scmp.eq.s32.totalorder %s17, 0
      %p85 = por %p83, %p84
      %p86 = scmp.ne.s32.totalorder %s74, %s75
      %p87 = scmp.eq.s32.totalorder %s18, 1
      %p88 = por %p86, %p87
      %p90 = scmp.ne.s32.totalorder %s75, %s89
      %p91 = scmp.eq.s32.totalorder %s18, 0
      %p92 = por %p90, %p91
      %s93 = ssub.s32 %s12, %s19
      %p94 = scmp.eq.s32.totalorder %s93, 0
      %s96 = sadd.s32 %s95, 1
      %s97 = scalar_select %p94, %s95, %s96
      %p100 = pneg %p94
      %p101 = scmp.eq.s32.totalorder %s12, 1
      %p102 = por %p100, %p101
      %p103 = scmp.ne.s32.totalorder %s95, %s98
      %p104 = scmp.eq.s32.totalorder %s12, 0
      %p105 = por %p103, %p104
      %p106 = scmp.ne.s32.totalorder %s95, %s98
      %p107 = scmp.eq.s32.totalorder %s17, 1
      %p108 = por %p106, %p107
      %p109 = scmp.ne.s32.totalorder %s98, %s99
      %p110 = scmp.eq.s32.totalorder %s17, 0
      %p111 = por %p109, %p110
      %p112 = scmp.ne.s32.totalorder %s98, %s99
      %p113 = scmp.eq.s32.totalorder %s18, 1
      %p114 = por %p112, %p113
      %p116 = scmp.ne.s32.totalorder %s99, %s115
      %p117 = scmp.eq.s32.totalorder %s18, 0
      %p118 = por %p116, %p117
      %p119 = scmp.le.s32.totalorder 1, %s12
      %p120 = scmp.lt.s32.totalorder %s12, 3
      %p121 = pnand %p119, %p120
      %p122 = pneg %p121
      // Predicated region
      $region9: #{tpu_custom_call.1} parent=5 // pred_check
        _
      $region10: #{tpu_custom_call.1} parent=5 // pred_check_branch
        %124 = sbr.rel (%p121) target = $region12
      $region11: #{tpu_custom_call.1} parent=5 // pred_region
        %s125 = ssub.s32 %s12, 1
        // Predicated region
        $region13: #{tpu_custom_call.1} parent=11 // pred_check
          %p126 = pneg %p85
        $region14: #{tpu_custom_call.1} parent=11 // pred_check_branch
          %128 = sbr.rel (%p126) target = $region16
        $region15: #{tpu_custom_call.1} parent=11 // pred_region
          _
        $region16: #{tpu_custom_call.1} parent=11 // pred_fallthru
          _
      $region12: #{tpu_custom_call.1} parent=5 // pred_fallthru
        _
      %p129 = scmp.lt.s32.totalorder %s12, 2
      // Predicated region
      $region17: #{tpu_custom_call.1} parent=5 // pred_check
        %p130 = pneg %p129
      $region18: #{tpu_custom_call.1} parent=5 // pred_check_branch
        %132 = sbr.rel (%p130) target = $region20
      $region19: #{tpu_custom_call.1} parent=5 // pred_region
        // Predicated region
        $region21: #{tpu_custom_call.1} parent=19 // pred_check
          %p133 = pneg %p32
        $region22: #{tpu_custom_call.1} parent=19 // pred_check_branch
          %135 = sbr.rel (%p133) target = $region24
        $region23: #{tpu_custom_call.1} parent=19 // pred_region
          %p136 = scmp.lt.s32.totalorder %s12, 1
          %s137 = scalar_select %p136, %s12, 1
          %s138 = smul.addr %s137, 2
          %s139 = smul.addr %s138, 8
          %s140 = scalar_lea.vmem %s0, %s139
        $region24: #{tpu_custom_call.1} parent=19 // pred_fallthru
          _
        // Predicated region
        $region25: #{tpu_custom_call.1} parent=19 // pred_check
          %p141 = pneg %p58
        $region26: #{tpu_custom_call.1} parent=19 // pred_check_branch
          %143 = sbr.rel (%p141) target = $region28
        $region27: #{tpu_custom_call.1} parent=19 // pred_region
          %p144 = scmp.lt.s32.totalorder %s12, 1
          %s145 = scalar_select %p144, %s12, 1
          %s146 = smul.addr %s145, 8
          %s147 = smul.addr %s146, 8
          %s148 = scalar_lea.vmem %s1, %s147
        $region28: #{tpu_custom_call.1} parent=19 // pred_fallthru
          _
      $region20: #{tpu_custom_call.1} parent=5 // pred_fallthru
        _
      %p149 = scmp.le.s32.totalorder 1, %s12
      %p150 = scmp.lt.s32.totalorder %s12, 3
      %p151 = pnand %p149, %p150
      %p152 = pneg %p151
      // Predicated region
      $region29: #{tpu_custom_call.1} parent=5 // pred_check
        _
      $region30: #{tpu_custom_call.1} parent=5 // pred_check_branch
        %154 = sbr.rel (%p151) target = $region32
      $region31: #{tpu_custom_call.1} parent=5 // pred_region
        %s155 = ssub.s32 %s12, 1
        %p156 = scmp.lt.s32.totalorder %s17, 1
        %s157 = scalar_select %p156, %s17, 1
        %s158 = smul.addr %s157, 2
        %s159 = smul.addr %s158, 8
        %s160 = scalar_lea.vmem %s0, %s159
        %p161 = pneg %p38
        %p162 = pneg %p35
        %p163 = scmp.lt.s32.totalorder %s17, 1
        %s164 = scalar_select %p163, %s17, 1
        %s165 = smul.addr %s164, 8
        %s166 = smul.addr %s165, 8
        %s167 = scalar_lea.vmem %s1, %s166
        %p168 = pneg %p64
        %p169 = pneg %p61
        %p170 = pneg %p85
        %p171 = pneg %p82
        %p172 = pneg %p111
        %p173 = pneg %p108
        %s174 = sand.u32 %s98, 1
        %s175 = scalar_lea.sflag [#allocation3], %s174
        %s176 = sand.u32 %s98, 1
        %s177 = smul.addr %s176, 64
        %s178 = scalar_lea.vmem [#allocation2], %s177
        %p179 = scmp.lt.s32.totalorder %s17, 1
        %s180 = scalar_select %p179, %s17, 1
        %s181 = smul.addr %s180, 2
        %s182 = smul.addr %s181, 8
        %s183 = scalar_lea.vmem %s0, %s182
        %p184 = scmp.lt.s32.totalorder %s17, 1
        %s185 = scalar_select %p184, %s17, 1
        %s186 = smul.addr %s185, 8
        %s187 = smul.addr %s186, 8
        %s188 = scalar_lea.vmem %s1, %s187
        %v190 = vld [vmem:[%s183] sm:$0xff]
        %v191 = vld [vmem:[%s183 + $0x8] sm:$0xff]
        %v192 = vpack.c.bf16 %v191, %v190
        %v193 = vld [vmem:[%s2] sm:$0xff]
        %v194 = vld [vmem:[%s2 + $0x8] sm:$0xff]
        %v195 = vld [vmem:[%s2 + $0x10] sm:$0xff]
        %v196 = vld [vmem:[%s2 + $0x18] sm:$0xff]
        %v197 = vpack.c.bf16 %v194, %v193
        %v198 = vpack.c.bf16 %v196, %v195
        %vm199 = vcmask 261120
        %v201 = vsel %vm199, %v192, 0
        %203 = vmatpush.bf16.msra.mxu0 0
        %204 = vmatpush.bf16.msra.mxu0 0
        %205 = vmatpush.bf16.msra.mxu0 0
        %206 = vmatpush.bf16.msra.mxu0 0
        %207 = vmatpush.bf16.msra.mxu0 0
        %208 = vmatpush.bf16.msra.mxu0 0
        %209 = vmatpush.bf16.msra.mxu0 %v198
        %210 = vmatpush.bf16.msra.mxu0 %v197
        %211 = vmatmul.bf16.gmra.mxu0 %v201
        %v212 = vpop.f32.mrf.mxu0
        %v213 = vadd.f32 0.0, %v212
        %v214 = vpop.f32.mrf.mxu0
        %v215 = vadd.f32 0.0, %v214
        %216 = vdwg.mxu0
        %vm217 = vcmp.ge.f32.partialorder %v213, 0.0
        %vm218 = vcmp.ge.f32.partialorder %v215, 0.0
        %v219 = vmul.f32 %v213, 0.01
        %v220 = vmul.f32 %v215, 0.01
        %v221 = vsel %vm217, %v213, %v219
        %v222 = vsel %vm218, %v215, %v220
        %v223 = vld [vmem:[%s188] sm:$0xff]
        %v224 = vld [vmem:[%s188 + $0x8] sm:$0xff]
        %v225 = vld [vmem:[%s188 + $0x10] sm:$0xff]
        %v226 = vld [vmem:[%s188 + $0x18] sm:$0xff]
        %v227 = vld [vmem:[%s188 + $0x20] sm:$0xff]
        %v228 = vld [vmem:[%s188 + $0x28] sm:$0xff]
        %v229 = vld [vmem:[%s188 + $0x30] sm:$0xff]
        %v230 = vld [vmem:[%s188 + $0x38] sm:$0xff]
        %s231 = scalar_lea.vmem %s2, 32
        %v232 = vld [vmem:[%s231] sm:$0xff]
        %v233 = vld [vmem:[%s231 + $0x8] sm:$0xff]
        %v234 = vld [vmem:[%s231 + $0x10] sm:$0xff]
        %v235 = vld [vmem:[%s231 + $0x18] sm:$0xff]
        %v236 = vpack.c.bf16 %v233, %v232
        %v237 = vpack.c.bf16 %v235, %v234
        %238 = vmatpush.bf16.msra.mxu0 0
        %239 = vmatpush.bf16.msra.mxu0 0
        %240 = vmatpush.bf16.msra.mxu0 0
        %241 = vmatpush.bf16.msra.mxu0 0
        %242 = vmatpush.bf16.msra.mxu0 0
        %243 = vmatpush.bf16.msra.mxu0 0
        %244 = vmatpush.bf16.msra.mxu0 %v237
        %245 = vmatpush.bf16.msra.mxu0 %v236
        %246 = vmatmul.bf16.gmra.mxu0 %v201
        %v247 = vpop.f32.mrf.mxu0
        %v248 = vadd.f32 0.0, %v247
        %v249 = vpop.f32.mrf.mxu0
        %v250 = vadd.f32 0.0, %v249
        %251 = vdwg.mxu0
        %v252 = vpack.c.bf16 %v224, %v223
        %v253 = vpack.c.bf16 %v226, %v225
        %v254 = vpack.c.bf16 %v228, %v227
        %v255 = vpack.c.bf16 %v230, %v229
        %v256 = vpack.c.bf16 %v250, %v248
        %vm257 = vcmask 130048
        %v259 = vsel %vm257, %v252, 0
        %v262 = vsel %vm257, %v253, 0
        %v265 = vsel %vm257, %v254, 0
        %v268 = vsel %vm257, %v255, 0
        %270 = vmatpush.bf16.msra.mxu0 0
        %271 = vmatpush.bf16.msra.mxu0 0
        %272 = vmatpush.bf16.msra.mxu0 0
        %273 = vmatpush.bf16.msra.mxu0 0
        %274 = vmatpush.bf16.msra.mxu0 0
        %275 = vmatpush.bf16.msra.mxu0 0
        %276 = vmatpush.bf16.msra.mxu0 0
        %277 = vmatpush.bf16.msra.mxu0 %v256
        %278 = vmatmul.bf16.gmra.mxu0 %v259
        %v279 = vpop.f32.mrf.mxu0
        %v280 = vadd.f32 0.0, %v279
        %v281 = vpop.f32.mrf.mxu0
        %v282 = vadd.f32 0.0, %v281
        %283 = vmatmul.bf16.gmra.mxu0 %v262
        %v284 = vpop.f32.mrf.mxu0
        %v285 = vadd.f32 0.0, %v284
        %v286 = vpop.f32.mrf.mxu0
        %v287 = vadd.f32 0.0, %v286
        %288 = vmatmul.bf16.gmra.mxu0 %v265
        %v289 = vpop.f32.mrf.mxu0
        %v290 = vadd.f32 0.0, %v289
        %v291 = vpop.f32.mrf.mxu0
        %v292 = vadd.f32 0.0, %v291
        %293 = vmatmul.bf16.gmra.mxu0 %v268
        %v294 = vpop.f32.mrf.mxu0
        %v295 = vadd.f32 0.0, %v294
        %v296 = vpop.f32.mrf.mxu0
        %v297 = vadd.f32 0.0, %v296
        %298 = vdwg.mxu0
        %vm299 = vcmp.ge.f32.partialorder %v280, 0.0
        %vm300 = vcmp.ge.f32.partialorder %v282, 0.0
        %vm301 = vcmp.ge.f32.partialorder %v285, 0.0
        %vm302 = vcmp.ge.f32.partialorder %v287, 0.0
        %vm303 = vcmp.ge.f32.partialorder %v290, 0.0
        %vm304 = vcmp.ge.f32.partialorder %v292, 0.0
        %vm305 = vcmp.ge.f32.partialorder %v295, 0.0
        %vm306 = vcmp.ge.f32.partialorder %v297, 0.0
        %v307 = vmul.f32 %v280, 0.01
        %v308 = vmul.f32 %v282, 0.01
        %v309 = vmul.f32 %v285, 0.01
        %v310 = vmul.f32 %v287, 0.01
        %v311 = vmul.f32 %v290, 0.01
        %v312 = vmul.f32 %v292, 0.01
        %v313 = vmul.f32 %v295, 0.01
        %v314 = vmul.f32 %v297, 0.01
        %v315 = vsel %vm299, %v280, %v307
        %v316 = vsel %vm300, %v282, %v308
        %v317 = vsel %vm301, %v285, %v309
        %v318 = vsel %vm302, %v287, %v310
        %v319 = vsel %vm303, %v290, %v311
        %v320 = vsel %vm304, %v292, %v312
        %v321 = vsel %vm305, %v295, %v313
        %v322 = vsel %vm306, %v297, %v314
        %v323 = vadd.f32 %v221, %v315
        %v324 = vadd.f32 %v222, %v316
        %v325 = vadd.f32 %v221, %v317
        %v326 = vadd.f32 %v222, %v318
        %v327 = vadd.f32 %v221, %v319
        %v328 = vadd.f32 %v222, %v320
        %v329 = vadd.f32 %v221, %v321
        %v330 = vadd.f32 %v222, %v322
        %v331 = vmul.f32 %v223, %v223
        %v332 = vmul.f32 %v224, %v224
        %v333 = vmul.f32 %v225, %v225
        %v334 = vmul.f32 %v226, %v226
        %v335 = vmul.f32 %v227, %v227
        %v336 = vmul.f32 %v228, %v228
        %v337 = vmul.f32 %v229, %v229
        %v338 = vmul.f32 %v230, %v230
        %s339 = scalar_lea.vmem %s2, 64
        %v340 = vld [vmem:[%s339] sm:$0xff]
        %v341 = vld [vmem:[%s339 + $0x8] sm:$0xff]
        %v342 = vld [vmem:[%s339 + $0x10] sm:$0xff]
        %v343 = vld [vmem:[%s339 + $0x18] sm:$0xff]
        %v344 = vpack.c.bf16 %v341, %v340
        %v345 = vpack.c.bf16 %v343, %v342
        %346 = vmatpush.bf16.msra.mxu0 0
        %347 = vmatpush.bf16.msra.mxu0 0
        %348 = vmatpush.bf16.msra.mxu0 0
        %349 = vmatpush.bf16.msra.mxu0 0
        %350 = vmatpush.bf16.msra.mxu0 0
        %351 = vmatpush.bf16.msra.mxu0 0
        %352 = vmatpush.bf16.msra.mxu0 %v345
        %353 = vmatpush.bf16.msra.mxu0 %v344
        %354 = vmatmul.bf16.gmra.mxu0 %v201
        %v355 = vpop.f32.mrf.mxu0
        %v356 = vadd.f32 0.0, %v355
        %v357 = vpop.f32.mrf.mxu0
        %v358 = vadd.f32 0.0, %v357
        %359 = vdwg.mxu0
        %v360 = vpack.c.bf16 %v332, %v331
        %v361 = vpack.c.bf16 %v334, %v333
        %v362 = vpack.c.bf16 %v336, %v335
        %v363 = vpack.c.bf16 %v338, %v337
        %v364 = vpack.c.bf16 %v358, %v356
        %v366 = vsel %vm257, %v360, 0
        %v369 = vsel %vm257, %v361, 0
        %v372 = vsel %vm257, %v362, 0
        %v375 = vsel %vm257, %v363, 0
        %377 = vmatpush.bf16.msra.mxu0 0
        %378 = vmatpush.bf16.msra.mxu0 0
        %379 = vmatpush.bf16.msra.mxu0 0
        %380 = vmatpush.bf16.msra.mxu0 0
        %381 = vmatpush.bf16.msra.mxu0 0
        %382 = vmatpush.bf16.msra.mxu0 0
        %383 = vmatpush.bf16.msra.mxu0 0
        %384 = vmatpush.bf16.msra.mxu0 %v364
        %385 = vmatmul.bf16.gmra.mxu0 %v366
        %v386 = vpop.f32.mrf.mxu0
        %v387 = vadd.f32 0.0, %v386
        %v388 = vpop.f32.mrf.mxu0
        %v389 = vadd.f32 0.0, %v388
        %390 = vmatmul.bf16.gmra.mxu0 %v369
        %v391 = vpop.f32.mrf.mxu0
        %v392 = vadd.f32 0.0, %v391
        %v393 = vpop.f32.mrf.mxu0
        %v394 = vadd.f32 0.0, %v393
        %395 = vmatmul.bf16.gmra.mxu0 %v372
        %v396 = vpop.f32.mrf.mxu0
        %v397 = vadd.f32 0.0, %v396
        %v398 = vpop.f32.mrf.mxu0
        %v399 = vadd.f32 0.0, %v398
        %400 = vmatmul.bf16.gmra.mxu0 %v375
        %v401 = vpop.f32.mrf.mxu0
        %v402 = vadd.f32 0.0, %v401
        %v403 = vpop.f32.mrf.mxu0
        %v404 = vadd.f32 0.0, %v403
        %405 = vdwg.mxu0
        %vm406 = vcmp.ge.f32.partialorder %v387, 0.0
        %vm407 = vcmp.ge.f32.partialorder %v389, 0.0
        %vm408 = vcmp.ge.f32.partialorder %v392, 0.0
        %vm409 = vcmp.ge.f32.partialorder %v394, 0.0
        %vm410 = vcmp.ge.f32.partialorder %v397, 0.0
        %vm411 = vcmp.ge.f32.partialorder %v399, 0.0
        %vm412 = vcmp.ge.f32.partialorder %v402, 0.0
        %vm413 = vcmp.ge.f32.partialorder %v404, 0.0
        %v414 = vmul.f32 %v387, 0.01
        %v415 = vmul.f32 %v389, 0.01
        %v416 = vmul.f32 %v392, 0.01
        %v417 = vmul.f32 %v394, 0.01
        %v418 = vmul.f32 %v397, 0.01
        %v419 = vmul.f32 %v399, 0.01
        %v420 = vmul.f32 %v402, 0.01
        %v421 = vmul.f32 %v404, 0.01
        %v422 = vsel %vm406, %v387, %v414
        %v423 = vsel %vm407, %v389, %v415
        %v424 = vsel %vm408, %v392, %v416
        %v425 = vsel %vm409, %v394, %v417
        %v426 = vsel %vm410, %v397, %v418
        %v427 = vsel %vm411, %v399, %v419
        %v428 = vsel %vm412, %v402, %v420
        %v429 = vsel %vm413, %v404, %v421
        %v430 = vadd.f32 %v323, %v422
        %v431 = vadd.f32 %v324, %v423
        %v432 = vadd.f32 %v325, %v424
        %v433 = vadd.f32 %v326, %v425
        %v434 = vadd.f32 %v327, %v426
        %v435 = vadd.f32 %v328, %v427
        %v436 = vadd.f32 %v329, %v428
        %v437 = vadd.f32 %v330, %v429
        %438 = vst [vmem:[%s178] sm:$0xff] %v430
        %439 = vst [vmem:[%s178 + $0x8] sm:$0xff] %v431
        %440 = vst [vmem:[%s178 + $0x10] sm:$0xff] %v432
        %441 = vst [vmem:[%s178 + $0x18] sm:$0xff] %v433
        %442 = vst [vmem:[%s178 + $0x20] sm:$0xff] %v434
        %443 = vst [vmem:[%s178 + $0x28] sm:$0xff] %v435
        %444 = vst [vmem:[%s178 + $0x30] sm:$0xff] %v436
        %445 = vst [vmem:[%s178 + $0x38] sm:$0xff] %v437
        %s446 = sand.u32 %s98, 1
        %s447 = scalar_lea.sflag [#allocation3], %s446
        %s448 = sand.u32 %s98, 1
        %s449 = smul.addr %s448, 64
        %s450 = scalar_lea.vmem [#allocation2], %s449
        // Predicated region
        $region33: #{tpu_custom_call.1} parent=31 // pred_check
          %p451 = pneg %p108
        $region34: #{tpu_custom_call.1} parent=31 // pred_check_branch
          %453 = sbr.rel (%p451) target = $region36
        $region35: #{tpu_custom_call.1} parent=31 // pred_region
          %455 = vsyncadd %s447, 0
          %s456 = smul.addr %s17, 8
          %s457 = smul.addr %s456, 8
          %s458 = scalar_lea.hbm %s3, %s457
          %s459 = sshll.u32 %s450, 4
          %s460 = int_to_ptr.vmem [resolvable:$true] %s459
          %s461 = sshll.u32 %s458, 4
          %s462 = int_to_ptr.hbm [resolvable:$true] %s461
          %467 = dma.vmem_to_hbm [thread:$0]  %s460, 1024, %s462, %s447, 128, 128, 8
        $region36: #{tpu_custom_call.1} parent=31 // pred_fallthru
          _
      $region32: #{tpu_custom_call.1} parent=5 // pred_fallthru
        _
      %p468 = scmp.le.s32.totalorder 2, %s12
      // Predicated region
      $region37: #{tpu_custom_call.1} parent=5 // pred_check
        %p469 = pneg %p468
      $region38: #{tpu_custom_call.1} parent=5 // pred_check_branch
        %471 = sbr.rel (%p469) target = $region40
      $region39: #{tpu_custom_call.1} parent=5 // pred_region
        %s472 = ssub.s32 %s12, 2
        // Predicated region
        $region41: #{tpu_custom_call.1} parent=39 // pred_check
          %p473 = pneg %p114
        $region42: #{tpu_custom_call.1} parent=39 // pred_check_branch
          %475 = sbr.rel (%p473) target = $region44
        $region43: #{tpu_custom_call.1} parent=39 // pred_region
          %s476 = sand.u32 %s99, 1
          %s477 = scalar_lea.sflag [#allocation3], %s476
          %s478 = sand.u32 %s99, 1
          %s479 = smul.addr %s478, 64
          %s480 = scalar_lea.vmem [#allocation2], %s479
          %482 = dma.done %s477, 1024
        $region44: #{tpu_custom_call.1} parent=39 // pred_fallthru
          _
      $region40: #{tpu_custom_call.1} parent=5 // pred_fallthru
        _
    $region6: #{tpu_custom_call.1} parent=1 // loop_footer
      %s16 = sadd.s32 1, %s12
    $region7: #{tpu_custom_call.1} parent=1 // loop_footer_branch
      %11 = sbr.rel target = $region3
    $region8: #{tpu_custom_call.1} parent=1 // loop_exit
      _
    %483 = vsyncpa [#allocation3], 1
    %s484 = scalar_lea.sflag [#allocation3], 1
    %485 = vsyncpa %s484, 1

</llo_original>
